<compile_context>
chip_gen: v6e
topology: v6e:2x2x1
jax: 0.10.0
libtpu: 0.0.40
codegen_flags: <defaults>
</compile_context>

<pallas_src>
import functools

import jax
import jax.numpy as jnp
from jax.experimental import pallas as pl
from jax.experimental.pallas import tpu as pltpu

_SELU_ALPHA = 1.6732632423543772848170429916717
_SELU_SCALE = 1.0507009873554804934193349852946

_LANE = 128  # vreg lane width (last-dim tiling unit)


def _round_up(n, m):
    return ((n + m - 1) // m) * m


def _selu_f32(x):
    # Clamp the exp argument: jnp.where evaluates both branches, so exp(large
    # positive) would otherwise generate inf in the dead branch.
    return _SELU_SCALE * jnp.where(
        x > 0, x, _SELU_ALPHA * (jnp.exp(jnp.minimum(x, 0.0)) - 1.0))


def _tpu_hw_params():
    """Return (vmem_capacity_bytes, num_tensorcores_per_chip), conservatively."""
    vmem_cap = 64 * 1024 * 1024   # safe default (v7x per-TC VMEM)
    num_tc = 1
    try:
        info = pltpu.get_tpu_info()
        cap = getattr(info, "vmem_capacity_bytes", None)
        if cap:
            vmem_cap = int(cap)
    except Exception:
        pass
    try:
        kind = jax.devices()[0].device_kind.lower()
    except Exception:
        kind = ""
    if "v7" in kind:
        num_tc = 2                                   # 2 TensorCores / chip
        vmem_cap = min(vmem_cap, 64 * 1024 * 1024)   # 64 MiB per TC
    elif any(g in kind for g in ("v4", "v5", "v6")):
        vmem_cap = max(vmem_cap, 128 * 1024 * 1024)  # 128 MiB physical VMEM
    return vmem_cap, num_tc


def _ae_kernel(x_ref, w1_ref, b1_ref, w2_ref, b2_ref, recon_ref, emb_ref, *, flag):
    """Fused encoder+decoder for one batch tile.

    x_ref     : [TB, Fp]   input tile (native dtype)
    w1_ref    : [Fp, Hp]   encoder weight (transposed), native dtype, resident
    b1_ref    : [1, Hp]    encoder bias (f32)
    w2_ref    : [Hp, Fp]   decoder weight (transposed), native dtype, resident
    b2_ref    : [1, Fp]    decoder bias (f32)
    recon_ref : [TB, Fp]   reconstruction output tile
    emb_ref   : [TB, Hp]   embedding output tile
    """
    # Encoder: MXU matmul in native operand dtype, f32 accumulation.
    h = jnp.dot(x_ref[...], w1_ref[...], preferred_element_type=jnp.float32)
    h = h + b1_ref[...]
    # Activation math kept in f32 (v5e VPU/EUP have no bf16).
    if flag == '1':
        emb_f32 = _selu_f32(h)
    else:  # flags '2' / '3' use Tanh encoders
        emb_f32 = jnp.tanh(h)

    # Single cast to the storage dtype; the same values are both stored and fed
    # to the decoder, so the returned embedding is exactly the one that produced
    # the reconstruction.
    emb = emb_f32.astype(emb_ref.dtype)
    emb_ref[...] = emb

    # Decoder: MXU matmul (native dtype operands), f32 accumulation, f32 tanh.
    r = jnp.dot(emb, w2_ref[...], preferred_element_type=jnp.float32)
    r = r + b2_ref[...]
    recon_ref[...] = jnp.tanh(r).astype(recon_ref.dtype)


def auto_encoder_v2_forward(x, w1t, b1, w2t, b2, *, flag='1', tile_b=None):
    """Fused autoencoder forward. Returns (Reconstruct, embedded), matching
    nn.Linear semantics (weights passed pre-transposed: W1t [F,H], W2t [H,F])."""
    B, F = x.shape
    H = w1t.shape[1]
    dtype = x.dtype
    itemsize = jnp.dtype(dtype).itemsize
    sublane = 8 if itemsize >= 4 else 32 // itemsize   # f32:8, bf16:16

    # Lane-dense feature/hidden dims (multiples of 128): unmasked stores, full
    # MXU column tiles. Zero padding keeps the math identical.
    F_pad = _round_up(F, _LANE)
    H_pad = _round_up(H, _LANE)

    vmem_cap, num_tc = _tpu_hw_params()
    vmem_budget = int(vmem_cap * 0.80)
    max_tile_b = 1024 if vmem_cap >= (96 << 20) else 512

    # Single-buffered resident weights/biases + double-buffered x/recon/emb tiles.
    weight_bytes = 2 * F_pad * H_pad * itemsize + (F_pad + H_pad) * 4

    def vmem_bytes(tb):
        io = 2 * tb * (2 * F_pad + H_pad) * itemsize   # double-buffered IO tiles
        return io + weight_bytes                       # resident weights (1x)

    if weight_bytes + 2 * sublane * (2 * F_pad + H_pad) * itemsize > vmem_budget:
        # TODO(synk): add a reduction-tiled (K-tiled) Pallas path for very large
        # F/H; fall back to plain XLA rather than VMEM-OOM at compile time.
        h = x.astype(jnp.float32) @ w1t.astype(jnp.float32) + b1.astype(jnp.float32)
        emb = _selu_f32(h) if flag == '1' else jnp.tanh(h)
        recon = jnp.tanh(emb @ w2t.astype(jnp.float32) + b2.astype(jnp.float32))
        return recon.astype(dtype), emb.astype(dtype)

    # ---- batch tile selection -------------------------------------------------
    if tile_b is None:
        tile_b = min(_round_up(B, sublane), max_tile_b)
        # Split the batch only on dual-TensorCore chips (v7x) so the "parallel"
        # grid axis can shard across cores, and only when each half is substantial.
        if num_tc >= 2:
            half = _round_up(pl.cdiv(B, 2), sublane)
            if half >= 256:
                tile_b = min(tile_b, half)
    tile_b = max(sublane, _round_up(tile_b, sublane))

    while vmem_bytes(tile_b) > vmem_budget and tile_b > sublane:
        tile_b = max(sublane, _round_up(tile_b // 2, sublane))

    # Ragged last block: rows are independent, OOB output writes are masked, so
    # no batch padding / output-slicing copies are needed.
    grid = pl.cdiv(B, tile_b)

    # ---- zero-pad only when feature/hidden dims are not already lane-dense ----
    x_p = x if F_pad == F else jnp.pad(x, ((0, 0), (0, F_pad - F)))
    w1_p = w1t.astype(dtype)
    w2_p = w2t.astype(dtype)
    if F_pad != F or H_pad != H:
        w1_p = jnp.pad(w1_p, ((0, F_pad - F), (0, H_pad - H)))
        w2_p = jnp.pad(w2_p, ((0, H_pad - H), (0, F_pad - F)))
    b1_p = b1.astype(jnp.float32).reshape(1, H)
    b2_p = b2.astype(jnp.float32).reshape(1, F)
    if H_pad != H:
        b1_p = jnp.pad(b1_p, ((0, 0), (0, H_pad - H)))
    if F_pad != F:
        b2_p = jnp.pad(b2_p, ((0, 0), (0, F_pad - F)))

    kernel = functools.partial(_ae_kernel, flag=flag)

    work_b = grid * tile_b
    cost = pl.CostEstimate(
        flops=int(4 * work_b * F_pad * H_pad),                       # two matmuls
        transcendentals=int(work_b * (H_pad + F_pad)),               # exp + tanh
        bytes_accessed=int(work_b * (2 * F_pad + H_pad) * itemsize   # x, recon, emb
                           + 2 * F_pad * H_pad * itemsize            # W1, W2
                           + (F_pad + H_pad) * 4),                   # biases
    )

    vmem_limit = int(min(max(int(1.5 * vmem_bytes(tile_b)), 16 << 20),
                         int(vmem_cap * 0.875)))

    out_shape = (
        jax.ShapeDtypeStruct((B, F_pad), dtype),
        jax.ShapeDtypeStruct((B, H_pad), dtype),
    )
    out_specs = [
        pl.BlockSpec((tile_b, F_pad), lambda i: (i, 0)),   # reconstruction
        pl.BlockSpec((tile_b, H_pad), lambda i: (i, 0)),   # embedding
    ]

    def _run(single_buffer_weights):
        if single_buffer_weights and hasattr(pl, "Buffered"):
            resident = dict(pipeline_mode=pl.Buffered(1))
        else:
            resident = {}
        in_specs = [
            pl.BlockSpec((tile_b, F_pad), lambda i: (i, 0)),               # x tile
            pl.BlockSpec((F_pad, H_pad), lambda i: (0, 0), **resident),    # W1^T
            pl.BlockSpec((1, H_pad), lambda i: (0, 0), **resident),        # b1
            pl.BlockSpec((H_pad, F_pad), lambda i: (0, 0), **resident),    # W2^T
            pl.BlockSpec((1, F_pad), lambda i: (0, 0), **resident),        # b2
        ]
        return pl.pallas_call(
            kernel,
            out_shape=out_shape,
            grid_spec=pltpu.PrefetchScalarGridSpec(
                num_scalar_prefetch=0,
                grid=(grid,),
                in_specs=in_specs,
                out_specs=out_specs,
            ),
            compiler_params=pltpu.CompilerParams(
                dimension_semantics=("parallel",),
                vmem_limit_bytes=vmem_limit,
            ),
            cost_estimate=cost,
        )(x_p, w1_p, b1_p, w2_p, b2_p)

    try:
        recon_p, emb_p = _run(True)
    except Exception:
        # TODO(synk): drop this fallback once pl.Buffered(1) single-buffering of
        # constant-index blocks is guaranteed on the deployed jax version.
        recon_p, emb_p = _run(False)

    recon = recon_p if F_pad == F else recon_p[:, :F]
    emb = emb_p if H_pad == H else emb_p[:, :H]
    return recon, emb


def _reference_forward(x, w1t, b1, w2t, b2, flag='1'):
    h = x.astype(jnp.float32) @ w1t + b1
    emb = _selu_f32(h) if flag == '1' else jnp.tanh(h)
    recon = jnp.tanh(emb @ w2t + b2)
    return recon, emb


if __name__ == "__main__":
    # Small shapes consistent with the module: batch=8, input_size=64, hidden_size=32.
    B, F, H = 8, 64, 32
    flag = '1'

    key = jax.random.PRNGKey(0)
    kx, kw1, kb1, kw2, kb2 = jax.random.split(key, 5)

    x = jax.random.normal(kx, (B, F), dtype=jnp.float32)
    bound1 = 1.0 / (F ** 0.5)
    bound2 = 1.0 / (H ** 0.5)
    w1t = jax.random.uniform(kw1, (F, H), jnp.float32, -bound1, bound1)
    b1 = jax.random.uniform(kb1, (H,), jnp.float32, -bound1, bound1)
    w2t = jax.random.uniform(kw2, (H, F), jnp.float32, -bound2, bound2)
    b2 = jax.random.uniform(kb2, (F,), jnp.float32, -bound2, bound2)

    recon, emb = auto_encoder_v2_forward(x, w1t, b1, w2t, b2, flag=flag)
    jax.block_until_ready((recon, emb))

    recon_ref, emb_ref = _reference_forward(x, w1t, b1, w2t, b2, flag=flag)
    assert recon.shape == (B, F) and emb.shape == (B, H)
    assert jnp.allclose(recon, recon_ref, atol=1e-5, rtol=1e-5)
    assert jnp.allclose(emb, emb_ref, atol=1e-5, rtol=1e-5)

    print("KERNEL_OK")
</pallas_src>

<mosaic_0001>
module attributes {stable_mosaic.version = 11 : i64} {
  func.func @_ae_kernel(%arg0: i32, %arg1: memref<8x128xf32, #tpu.memory_space<vmem>>, %arg2: memref<128x128xf32, #tpu.memory_space<vmem>>, %arg3: memref<1x128xf32, #tpu.memory_space<vmem>>, %arg4: memref<128x128xf32, #tpu.memory_space<vmem>>, %arg5: memref<1x128xf32, #tpu.memory_space<vmem>>, %arg6: memref<8x128xf32, #tpu.memory_space<vmem>>, %arg7: memref<8x128xf32, #tpu.memory_space<vmem>>) attributes {dimension_semantics = [#tpu.dimension_semantics<parallel>], iteration_bounds = array<i64: 1>, scalar_prefetch = 0 : i64, scratch_operands = 0 : i64, tpu.core_type = #tpu.core_type<tc>, window_params = [{transform_indices = @transform_0, window_bounds = array<i64: 8, 128>}, {pipeline_mode = #tpu.pipeline_mode<synchronous>, transform_indices = @transform_1, window_bounds = array<i64: 128, 128>}, {pipeline_mode = #tpu.pipeline_mode<synchronous>, transform_indices = @transform_2, window_bounds = array<i64: 1, 128>}, {pipeline_mode = #tpu.pipeline_mode<synchronous>, transform_indices = @transform_3, window_bounds = array<i64: 128, 128>}, {pipeline_mode = #tpu.pipeline_mode<synchronous>, transform_indices = @transform_4, window_bounds = array<i64: 1, 128>}, {transform_indices = @transform_5, window_bounds = array<i64: 8, 128>}, {transform_indices = @transform_6, window_bounds = array<i64: 8, 128>}]} {
    %c0 = arith.constant 0 : index
    %c0_0 = arith.constant 0 : index
    %0 = vector.load %arg1[%c0, %c0_0] : memref<8x128xf32, #tpu.memory_space<vmem>>, vector<8x128xf32>
    %c0_1 = arith.constant 0 : index
    %c0_2 = arith.constant 0 : index
    %1 = vector.load %arg2[%c0_1, %c0_2] : memref<128x128xf32, #tpu.memory_space<vmem>>, vector<128x128xf32>
    %cst = arith.constant dense<0.000000e+00> : vector<8x128xf32>
    %2 = tpu.matmul %0, %1, %cst {dimension_numbers = #tpu.dot_dimension_numbers<[1], [0], [0], [1], [0, 0, 1, 1], [], []>} : vector<8x128xf32>, vector<128x128xf32>, vector<8x128xf32> -> vector<8x128xf32>
    %c0_3 = arith.constant 0 : index
    %c0_4 = arith.constant 0 : index
    %3 = vector.load %arg3[%c0_3, %c0_4] : memref<1x128xf32, #tpu.memory_space<vmem>>, vector<1x128xf32>
    %4 = vector.broadcast %3 : vector<1x128xf32> to vector<8x128xf32>
    %5 = arith.addf %2, %4 : vector<8x128xf32>
    %cst_5 = arith.constant 0.000000e+00 : f32
    %6 = vector.broadcast %cst_5 : f32 to vector<8x128xf32>
    %7 = arith.cmpf ogt, %5, %6 : vector<8x128xf32>
    %cst_6 = arith.constant 0.000000e+00 : f32
    %8 = vector.broadcast %cst_6 : f32 to vector<8x128xf32>
    %9 = arith.minimumf %5, %8 : vector<8x128xf32>
    %10 = math.exp %9 : vector<8x128xf32>
    %cst_7 = arith.constant 1.000000e+00 : f32
    %11 = vector.broadcast %cst_7 : f32 to vector<8x128xf32>
    %12 = arith.subf %10, %11 : vector<8x128xf32>
    %cst_8 = arith.constant 1.67326319 : f32
    %13 = vector.broadcast %cst_8 : f32 to vector<8x128xf32>
    %14 = arith.mulf %13, %12 : vector<8x128xf32>
    %15 = arith.select %7, %5, %14 : vector<8x128xi1>, vector<8x128xf32>
    %cst_9 = arith.constant 1.05070102 : f32
    %16 = vector.broadcast %cst_9 : f32 to vector<8x128xf32>
    %17 = arith.mulf %16, %15 : vector<8x128xf32>
    %c0_10 = arith.constant 0 : index
    %c0_11 = arith.constant 0 : index
    %18 = vector.load %arg7[%c0_10, %c0_11] : memref<8x128xf32, #tpu.memory_space<vmem>>, vector<8x128xf32>
    tpu.vector_store %arg7[%c0_10, %c0_11], %17 {strides = array<i32>} : memref<8x128xf32, #tpu.memory_space<vmem>>, vector<8x128xf32>,
    %c0_12 = arith.constant 0 : index
    %c0_13 = arith.constant 0 : index
    %19 = vector.load %arg4[%c0_12, %c0_13] : memref<128x128xf32, #tpu.memory_space<vmem>>, vector<128x128xf32>
    %cst_14 = arith.constant dense<0.000000e+00> : vector<8x128xf32>
    %20 = tpu.matmul %17, %19, %cst_14 {dimension_numbers = #tpu.dot_dimension_numbers<[1], [0], [0], [1], [0, 0, 1, 1], [], []>} : vector<8x128xf32>, vector<128x128xf32>, vector<8x128xf32> -> vector<8x128xf32>
    %c0_15 = arith.constant 0 : index
    %c0_16 = arith.constant 0 : index
    %21 = vector.load %arg5[%c0_15, %c0_16] : memref<1x128xf32, #tpu.memory_space<vmem>>, vector<1x128xf32>
    %22 = vector.broadcast %21 : vector<1x128xf32> to vector<8x128xf32>
    %23 = arith.addf %20, %22 : vector<8x128xf32>
    %24 = math.tanh %23 : vector<8x128xf32>
    %c0_17 = arith.constant 0 : index
    %c0_18 = arith.constant 0 : index
    %25 = vector.load %arg6[%c0_17, %c0_18] : memref<8x128xf32, #tpu.memory_space<vmem>>, vector<8x128xf32>
    tpu.vector_store %arg6[%c0_17, %c0_18], %24 {strides = array<i32>} : memref<8x128xf32, #tpu.memory_space<vmem>>, vector<8x128xf32>,
    return
  }
  func.func @transform_0(%arg0: i32) -> (i32, i32) {
    %c0_i32 = arith.constant 0 : i32
    %c0_i32_0 = arith.constant 0 : i32
    return %arg0, %c0_i32 : i32, i32
  }
  func.func @transform_1(%arg0: i32) -> (i32, i32) {
    %c0_i32 = arith.constant 0 : i32
    %c0_i32_0 = arith.constant 0 : i32
    %c0_i32_1 = arith.constant 0 : i32
    return %c0_i32, %c0_i32_0 : i32, i32
  }
  func.func @transform_2(%arg0: i32) -> (i32, i32) {
    %c0_i32 = arith.constant 0 : i32
    %c0_i32_0 = arith.constant 0 : i32
    %c0_i32_1 = arith.constant 0 : i32
    return %c0_i32, %c0_i32_0 : i32, i32
  }
  func.func @transform_3(%arg0: i32) -> (i32, i32) {
    %c0_i32 = arith.constant 0 : i32
    %c0_i32_0 = arith.constant 0 : i32
    %c0_i32_1 = arith.constant 0 : i32
    return %c0_i32, %c0_i32_0 : i32, i32
  }
  func.func @transform_4(%arg0: i32) -> (i32, i32) {
    %c0_i32 = arith.constant 0 : i32
    %c0_i32_0 = arith.constant 0 : i32
    %c0_i32_1 = arith.constant 0 : i32
    return %c0_i32, %c0_i32_0 : i32, i32
  }
  func.func @transform_5(%arg0: i32) -> (i32, i32) {
    %c0_i32 = arith.constant 0 : i32
    %c0_i32_0 = arith.constant 0 : i32
    return %arg0, %c0_i32 : i32, i32
  }
  func.func @transform_6(%arg0: i32) -> (i32, i32) {
    %c0_i32 = arith.constant 0 : i32
    %c0_i32_0 = arith.constant 0 : i32
    return %arg0, %c0_i32 : i32, i32
  }
}

module attributes {stable_mosaic.version = 11 : i64} {
  func.func @_ae_kernel(%arg0: i32, %arg1: memref<8x128xf32, #tpu.memory_space<vmem>>, %arg2: memref<128x128xf32, #tpu.memory_space<vmem>>, %arg3: memref<1x128xf32, #tpu.memory_space<vmem>>, %arg4: memref<128x128xf32, #tpu.memory_space<vmem>>, %arg5: memref<1x128xf32, #tpu.memory_space<vmem>>, %arg6: memref<8x128xf32, #tpu.memory_space<vmem>>, %arg7: memref<8x128xf32, #tpu.memory_space<vmem>>) attributes {dimension_semantics = [#tpu.dimension_semantics<parallel>], iteration_bounds = array<i64: 1>, scalar_prefetch = 0 : i64, scratch_operands = 0 : i64, tpu.core_type = #tpu.core_type<tc>, window_params = [{transform_indices = @transform_0, window_bounds = array<i64: 8, 128>}, {pipeline_mode = #tpu.pipeline_mode<synchronous>, transform_indices = @transform_1, window_bounds = array<i64: 128, 128>}, {pipeline_mode = #tpu.pipeline_mode<synchronous>, transform_indices = @transform_2, window_bounds = array<i64: 1, 128>}, {pipeline_mode = #tpu.pipeline_mode<synchronous>, transform_indices = @transform_3, window_bounds = array<i64: 128, 128>}, {pipeline_mode = #tpu.pipeline_mode<synchronous>, transform_indices = @transform_4, window_bounds = array<i64: 1, 128>}, {transform_indices = @transform_5, window_bounds = array<i64: 8, 128>}, {transform_indices = @transform_6, window_bounds = array<i64: 8, 128>}]} {
    %c0 = arith.constant 0 : index
    %c0_0 = arith.constant 0 : index
    %0 = vector.load %arg1[%c0, %c0_0] : memref<8x128xf32, #tpu.memory_space<vmem>>, vector<8x128xf32>
    %c0_1 = arith.constant 0 : index
    %c0_2 = arith.constant 0 : index
    %1 = vector.load %arg2[%c0_1, %c0_2] : memref<128x128xf32, #tpu.memory_space<vmem>>, vector<128x128xf32>
    %cst = arith.constant dense<0.000000e+00> : vector<8x128xf32>
    %2 = tpu.matmul %0, %1, %cst {dimension_numbers = #tpu.dot_dimension_numbers<[1], [0], [0], [1], [0, 0, 1, 1], [], []>} : vector<8x128xf32>, vector<128x128xf32>, vector<8x128xf32> -> vector<8x128xf32>
    %c0_3 = arith.constant 0 : index
    %c0_4 = arith.constant 0 : index
    %3 = vector.load %arg3[%c0_3, %c0_4] : memref<1x128xf32, #tpu.memory_space<vmem>>, vector<1x128xf32>
    %4 = vector.broadcast %3 : vector<1x128xf32> to vector<8x128xf32>
    %5 = arith.addf %2, %4 : vector<8x128xf32>
    %cst_5 = arith.constant 0.000000e+00 : f32
    %6 = vector.broadcast %cst_5 : f32 to vector<8x128xf32>
    %7 = arith.cmpf ogt, %5, %6 : vector<8x128xf32>
    %cst_6 = arith.constant 0.000000e+00 : f32
    %8 = vector.broadcast %cst_6 : f32 to vector<8x128xf32>
    %9 = arith.minimumf %5, %8 : vector<8x128xf32>
    %10 = math.exp %9 : vector<8x128xf32>
    %cst_7 = arith.constant 1.000000e+00 : f32
    %11 = vector.broadcast %cst_7 : f32 to vector<8x128xf32>
    %12 = arith.subf %10, %11 : vector<8x128xf32>
    %cst_8 = arith.constant 1.67326319 : f32
    %13 = vector.broadcast %cst_8 : f32 to vector<8x128xf32>
    %14 = arith.mulf %13, %12 : vector<8x128xf32>
    %15 = arith.select %7, %5, %14 : vector<8x128xi1>, vector<8x128xf32>
    %cst_9 = arith.constant 1.05070102 : f32
    %16 = vector.broadcast %cst_9 : f32 to vector<8x128xf32>
    %17 = arith.mulf %16, %15 : vector<8x128xf32>
    %c0_10 = arith.constant 0 : index
    %c0_11 = arith.constant 0 : index
    %18 = vector.load %arg7[%c0_10, %c0_11] : memref<8x128xf32, #tpu.memory_space<vmem>>, vector<8x128xf32>
    tpu.vector_store %arg7[%c0_10, %c0_11], %17 {strides = array<i32>} : memref<8x128xf32, #tpu.memory_space<vmem>>, vector<8x128xf32>,
    %c0_12 = arith.constant 0 : index
    %c0_13 = arith.constant 0 : index
    %19 = vector.load %arg4[%c0_12, %c0_13] : memref<128x128xf32, #tpu.memory_space<vmem>>, vector<128x128xf32>
    %cst_14 = arith.constant dense<0.000000e+00> : vector<8x128xf32>
    %20 = tpu.matmul %17, %19, %cst_14 {dimension_numbers = #tpu.dot_dimension_numbers<[1], [0], [0], [1], [0, 0, 1, 1], [], []>} : vector<8x128xf32>, vector<128x128xf32>, vector<8x128xf32> -> vector<8x128xf32>
    %c0_15 = arith.constant 0 : index
    %c0_16 = arith.constant 0 : index
    %21 = vector.load %arg5[%c0_15, %c0_16] : memref<1x128xf32, #tpu.memory_space<vmem>>, vector<1x128xf32>
    %22 = vector.broadcast %21 : vector<1x128xf32> to vector<8x128xf32>
    %23 = arith.addf %20, %22 : vector<8x128xf32>
    %24 = math.tanh %23 : vector<8x128xf32>
    %c0_17 = arith.constant 0 : index
    %c0_18 = arith.constant 0 : index
    %25 = vector.load %arg6[%c0_17, %c0_18] : memref<8x128xf32, #tpu.memory_space<vmem>>, vector<8x128xf32>
    tpu.vector_store %arg6[%c0_17, %c0_18], %24 {strides = array<i32>} : memref<8x128xf32, #tpu.memory_space<vmem>>, vector<8x128xf32>,
    return
  }
  func.func @transform_0(%arg0: i32) -> (i32, i32) {
    %c0_i32 = arith.constant 0 : i32
    %c0_i32_0 = arith.constant 0 : i32
    return %arg0, %c0_i32 : i32, i32
  }
  func.func @transform_1(%arg0: i32) -> (i32, i32) {
    %c0_i32 = arith.constant 0 : i32
    %c0_i32_0 = arith.constant 0 : i32
    %c0_i32_1 = arith.constant 0 : i32
    return %c0_i32, %c0_i32_0 : i32, i32
  }
  func.func @transform_2(%arg0: i32) -> (i32, i32) {
    %c0_i32 = arith.constant 0 : i32
    %c0_i32_0 = arith.constant 0 : i32
    %c0_i32_1 = arith.constant 0 : i32
    return %c0_i32, %c0_i32_0 : i32, i32
  }
  func.func @transform_3(%arg0: i32) -> (i32, i32) {
    %c0_i32 = arith.constant 0 : i32
    %c0_i32_0 = arith.constant 0 : i32
    %c0_i32_1 = arith.constant 0 : i32
    return %c0_i32, %c0_i32_0 : i32, i32
  }
  func.func @transform_4(%arg0: i32) -> (i32, i32) {
    %c0_i32 = arith.constant 0 : i32
    %c0_i32_0 = arith.constant 0 : i32
    %c0_i32_1 = arith.constant 0 : i32
    return %c0_i32, %c0_i32_0 : i32, i32
  }
  func.func @transform_5(%arg0: i32) -> (i32, i32) {
    %c0_i32 = arith.constant 0 : i32
    %c0_i32_0 = arith.constant 0 : i32
    return %arg0, %c0_i32 : i32, i32
  }
  func.func @transform_6(%arg0: i32) -> (i32, i32) {
    %c0_i32 = arith.constant 0 : i32
    %c0_i32_0 = arith.constant 0 : i32
    return %arg0, %c0_i32 : i32, i32
  }
}

</mosaic_0001>

<llo_original>
// kernel: tpu_custom_call.1
$region0: #{tpu_custom_call.1}
  #allocation0 [shape = 'u32[]', space=smem, size = 0x4, offset = 0x4, fixed_abs, tag = 'smem constant byte address 0x4 - core index']
  #allocation1 [shape = 'u32[144,128]{1,0:T(1,128)}', space=vmem, size = 0x12000, scoped, tag = 'internal scratch']
  %s0 = inlined_call_operand.hbm [shape: f32[8,128], index: 0, kind: input, shape index: {}]
  %s1 = inlined_call_operand.hbm [shape: f32[128,128], index: 1, kind: input, shape index: {}]
  %s2 = inlined_call_operand.vmem [shape: f32[1,128], index: 2, kind: input, shape index: {}]
  %s3 = inlined_call_operand.hbm [shape: f32[128,128], index: 3, kind: input, shape index: {}]
  %s4 = inlined_call_operand.vmem [shape: f32[1,128], index: 4, kind: input, shape index: {}]
  %s5 = inlined_call_operand.hbm [shape: f32[8,128], index: 5, kind: output, shape index: {0}]
  %s6 = inlined_call_operand.hbm [shape: f32[8,128], index: 6, kind: output, shape index: {1}]
  %7 = xla_tuple %s5, %s6
  %s8 = sld [smem:[#allocation0]]
  $region50: #{tpu_custom_call.1} parent=0
    _
  %s10 = ssub.s32 1, %s8
  %s11 = scalar_select 0, %s10, %s8
  $region1: #{tpu_custom_call.1} parent=0
    #allocation2 [shape = 'u8[4096]{0}', space=vmem, size = 0x1000, scoped, tag = 'input window, operand 0, single buffered']
    #allocation3 [shape = 's32[1]{0}', space=sflag, size = 0x4, scoped, tag = 'scoped memory for tpu_custom_call.1']
    #allocation4 [shape = 's32[1]{0}', space=sflag, size = 0x4, scoped, tag = 'scoped memory for tpu_custom_call.1']
    #allocation5 [shape = 'u8[65536]{0}', space=vmem, size = 0x10000, scoped, tag = 'input window, operand 1, single buffered']
    #allocation6 [shape = 's32[1]{0}', space=sflag, size = 0x4, scoped, tag = 'scoped memory for tpu_custom_call.1']
    #allocation7 [shape = 'u8[65536]{0}', space=vmem, size = 0x10000, scoped, tag = 'input window, operand 3, single buffered']
    #allocation8 [shape = 'u8[4096]{0}', space=vmem, size = 0x1000, scoped, tag = 'output window, operand 0, single buffered']
    #allocation9 [shape = 'u8[4096]{0}', space=vmem, size = 0x1000, scoped, tag = 'output window, operand 1, single buffered']
    #allocation10 [shape = 's32[1]{0}', space=sflag, size = 0x4, scoped, tag = 'scoped memory for tpu_custom_call.1']
    %12 = vsyncpa [#allocation3], 0
    %13 = vsyncpa [#allocation6], 0
    %14 = vsyncpa [#allocation4], 0
    %15 = vsyncpa [#allocation10], 0
    // Predicated region
    $region2: #{tpu_custom_call.1} parent=1 // pred_check
      _
    $region3: #{tpu_custom_call.1} parent=1 // pred_check_branch
      %17 = sbr.rel (0) target = $region5
    $region4: #{tpu_custom_call.1} parent=1 // pred_region
      %s19 = ssub.s32 128, 128
      %20 = vsyncadd [#allocation3], %s19
      %s22 = sshll.u32 [#allocation2], 4
      %s23 = int_to_ptr.vmem [resolvable:$true] %s22
      %25 = dma.hbm_to_vmem [thread:$0]  %s0, 128, %s23, [#allocation3]
    $region5: #{tpu_custom_call.1} parent=1 // pred_fallthru
      _
    // Predicated region
    $region6: #{tpu_custom_call.1} parent=1 // pred_check
      _
    $region7: #{tpu_custom_call.1} parent=1 // pred_check_branch
      %27 = sbr.rel (0) target = $region9
    $region8: #{tpu_custom_call.1} parent=1 // pred_region
      %s29 = ssub.s32 2048, 2048
      %30 = vsyncadd [#allocation6], %s29
      %s31 = sshll.u32 [#allocation5], 4
      %s32 = int_to_ptr.vmem [resolvable:$true] %s31
      %37 = dma.hbm_to_vmem [thread:$0]  %s1, 2048, %s32, [#allocation6], 128, 128, 8
    $region9: #{tpu_custom_call.1} parent=1 // pred_fallthru
      _
    // Predicated region
    $region10: #{tpu_custom_call.1} parent=1 // pred_check
      _
    $region11: #{tpu_custom_call.1} parent=1 // pred_check_branch
      %39 = sbr.rel (0) target = $region13
    $region12: #{tpu_custom_call.1} parent=1 // pred_region
      _
    $region13: #{tpu_custom_call.1} parent=1 // pred_fallthru
      _
    // Predicated region
    $region14: #{tpu_custom_call.1} parent=1 // pred_check
      _
    $region15: #{tpu_custom_call.1} parent=1 // pred_check_branch
      %41 = sbr.rel (0) target = $region17
    $region16: #{tpu_custom_call.1} parent=1 // pred_region
      %s43 = ssub.s32 2048, 2048
      %44 = vsyncadd [#allocation6], %s43
      %s45 = sshll.u32 [#allocation7], 4
      %s46 = int_to_ptr.vmem [resolvable:$true] %s45
      %51 = dma.hbm_to_vmem [thread:$0]  %s3, 2048, %s46, [#allocation6], 128, 128, 8
    $region17: #{tpu_custom_call.1} parent=1 // pred_fallthru
      _
    // Predicated region
    $region18: #{tpu_custom_call.1} parent=1 // pred_check
      _
    $region19: #{tpu_custom_call.1} parent=1 // pred_check_branch
      %53 = sbr.rel (0) target = $region21
    $region20: #{tpu_custom_call.1} parent=1 // pred_region
      _
    $region21: #{tpu_custom_call.1} parent=1 // pred_fallthru
      _
    // Predicated region
    $region22: #{tpu_custom_call.1} parent=1 // pred_check
      _
    $region23: #{tpu_custom_call.1} parent=1 // pred_check_branch
      %55 = sbr.rel (0) target = $region25
    $region24: #{tpu_custom_call.1} parent=1 // pred_region
      %56 = dma.done [#allocation3], 128
    $region25: #{tpu_custom_call.1} parent=1 // pred_fallthru
      _
    // Predicated region
    $region26: #{tpu_custom_call.1} parent=1 // pred_check
      _
    $region27: #{tpu_custom_call.1} parent=1 // pred_check_branch
      %58 = sbr.rel (0) target = $region29
    $region28: #{tpu_custom_call.1} parent=1 // pred_region
      %59 = dma.done [#allocation6], 2048
    $region29: #{tpu_custom_call.1} parent=1 // pred_fallthru
      _
    // Predicated region
    $region30: #{tpu_custom_call.1} parent=1 // pred_check
      _
    $region31: #{tpu_custom_call.1} parent=1 // pred_check_branch
      %61 = sbr.rel (0) target = $region33
    $region32: #{tpu_custom_call.1} parent=1 // pred_region
      %62 = dma.done [#allocation6], 2048
    $region33: #{tpu_custom_call.1} parent=1 // pred_fallthru
      _
    %v63 = vld [vmem:[#allocation2] sm:$0xff]
    %v64 = vld [vmem:[#allocation5] sm:$0xff]
    %v65 = vld [vmem:[#allocation5 + $0x8] sm:$0xff]
    %v66 = vld [vmem:[#allocation5 + $0x10] sm:$0xff]
    %v67 = vld [vmem:[#allocation5 + $0x18] sm:$0xff]
    %v68 = vld [vmem:[#allocation5 + $0x20] sm:$0xff]
    %v69 = vld [vmem:[#allocation5 + $0x28] sm:$0xff]
    %v70 = vld [vmem:[#allocation5 + $0x30] sm:$0xff]
    %v71 = vld [vmem:[#allocation5 + $0x38] sm:$0xff]
    %v72 = vld [vmem:[#allocation5 + $0x40] sm:$0xff]
    %v73 = vld [vmem:[#allocation5 + $0x48] sm:$0xff]
    %v74 = vld [vmem:[#allocation5 + $0x50] sm:$0xff]
    %v75 = vld [vmem:[#allocation5 + $0x58] sm:$0xff]
    %v76 = vld [vmem:[#allocation5 + $0x60] sm:$0xff]
    %v77 = vld [vmem:[#allocation5 + $0x68] sm:$0xff]
    %v78 = vld [vmem:[#allocation5 + $0x70] sm:$0xff]
    %v79 = vld [vmem:[#allocation5 + $0x78] sm:$0xff]
    %v80 = vld [vmem:[%s2] sm:$0x1]
    %v82 = vlaneseq
    %v83 = vshrl.u32 %v82, 7
    %v84 = vsub.s32 0, %v83
    %v85 = vrot.slane %v80, %v84
    %87 = vmatprep.subr.mxu0 0.0
    %88 = vmatpush1.msra.mxu0 %v79
    %89 = vmatprep.subr.mxu0 0.0
    %90 = vmatpush1.msra.mxu0 %v78
    %91 = vmatprep.subr.mxu0 0.0
    %92 = vmatpush1.msra.mxu0 %v77
    %93 = vmatprep.subr.mxu0 0.0
    %94 = vmatpush1.msra.mxu0 %v76
    %95 = vmatprep.subr.mxu0 0.0
    %96 = vmatpush1.msra.mxu0 %v75
    %97 = vmatprep.subr.mxu0 0.0
    %98 = vmatpush1.msra.mxu0 %v74
    %99 = vmatprep.subr.mxu0 0.0
    %100 = vmatpush1.msra.mxu0 %v73
    %101 = vmatprep.subr.mxu0 0.0
    %102 = vmatpush1.msra.mxu0 %v72
    %103 = vmatprep.subr.mxu0 0.0
    %104 = vmatpush1.msra.mxu0 %v71
    %105 = vmatprep.subr.mxu0 0.0
    %106 = vmatpush1.msra.mxu0 %v70
    %107 = vmatprep.subr.mxu0 0.0
    %108 = vmatpush1.msra.mxu0 %v69
    %109 = vmatprep.subr.mxu0 0.0
    %110 = vmatpush1.msra.mxu0 %v68
    %111 = vmatprep.subr.mxu0 0.0
    %112 = vmatpush1.msra.mxu0 %v67
    %113 = vmatprep.subr.mxu0 0.0
    %114 = vmatpush1.msra.mxu0 %v66
    %115 = vmatprep.subr.mxu0 0.0
    %116 = vmatpush1.msra.mxu0 %v65
    %117 = vmatprep.subr.mxu0 0.0
    %118 = vmatpush1.msra.mxu0 %v64
    %119 = vmatprep.subr.mxu0 0.0
    %120 = vmatpush2.msra.mxu0 0.0
    %121 = vmatprep.subr.mxu0 0.0
    %122 = vmatpush2.msra.mxu0 0.0
    %123 = vmatprep.subr.mxu0 0.0
    %124 = vmatpush2.msra.mxu0 0.0
    %125 = vmatprep.subr.mxu0 0.0
    %126 = vmatpush2.msra.mxu0 0.0
    %127 = vmatprep.subr.mxu0 0.0
    %128 = vmatpush2.msra.mxu0 0.0
    %129 = vmatprep.subr.mxu0 0.0
    %130 = vmatpush2.msra.mxu0 0.0
    %131 = vmatprep.subr.mxu0 0.0
    %132 = vmatpush2.msra.mxu0 0.0
    %133 = vmatprep.subr.mxu0 0.0
    %134 = vmatpush2.msra.mxu0 0.0
    %135 = vmatprep.subr.mxu0 0.0
    %136 = vmatpush2.msra.mxu0 0.0
    %137 = vmatprep.subr.mxu0 0.0
    %138 = vmatpush2.msra.mxu0 0.0
    %139 = vmatprep.subr.mxu0 0.0
    %140 = vmatpush2.msra.mxu0 0.0
    %141 = vmatprep.subr.mxu0 0.0
    %142 = vmatpush2.msra.mxu0 0.0
    %143 = vmatprep.subr.mxu0 0.0
    %144 = vmatpush2.msra.mxu0 0.0
    %145 = vmatprep.subr.mxu0 0.0
    %146 = vmatpush2.msra.mxu0 0.0
    %147 = vmatprep.subr.mxu0 0.0
    %148 = vmatpush2.msra.mxu0 0.0
    %149 = vmatprep.subr.mxu0 0.0
    %150 = vmatpush2.msra.mxu0 0.0
    %151 = vmatprep.mubr.f32.mxu0 0.0
    %152 = vmatmul.mubr.f32.gmra.mxu0 %v63
    %v153 = vpop.f32.mrf.mxu0
    %v154 = vadd.f32 %v85, %v153
    %v155 = vpop.f32.mrf.mxu0
    %156 = vdwg.mxu0
    %vm157 = vcmp.gt.f32.partialorder %v154, 0.0
    %v158 = vmin.f32 %v154, 0.0
    %v159 = vmul.f32 %v158, 1.442695
    %v160 = vpow.pop %v159
    %v161 = vsub.f32 %v160, 1.0
    %v162 = vmul.f32 %v161, 1.6732632
    %v163 = vsel %vm157, %v154, %v162
    %v164 = vmul.f32 %v163, 1.050701
    %165 = vst [vmem:[#allocation9] sm:$0xff] %v164
    %v166 = vld [vmem:[#allocation7] sm:$0xff]
    %v167 = vld [vmem:[#allocation7 + $0x8] sm:$0xff]
    %v168 = vld [vmem:[#allocation7 + $0x10] sm:$0xff]
    %v169 = vld [vmem:[#allocation7 + $0x18] sm:$0xff]
    %v170 = vld [vmem:[#allocation7 + $0x20] sm:$0xff]
    %v171 = vld [vmem:[#allocation7 + $0x28] sm:$0xff]
    %v172 = vld [vmem:[#allocation7 + $0x30] sm:$0xff]
    %v173 = vld [vmem:[#allocation7 + $0x38] sm:$0xff]
    %v174 = vld [vmem:[#allocation7 + $0x40] sm:$0xff]
    %v175 = vld [vmem:[#allocation7 + $0x48] sm:$0xff]
    %v176 = vld [vmem:[#allocation7 + $0x50] sm:$0xff]
    %v177 = vld [vmem:[#allocation7 + $0x58] sm:$0xff]
    %v178 = vld [vmem:[#allocation7 + $0x60] sm:$0xff]
    %v179 = vld [vmem:[#allocation7 + $0x68] sm:$0xff]
    %v180 = vld [vmem:[#allocation7 + $0x70] sm:$0xff]
    %v181 = vld [vmem:[#allocation7 + $0x78] sm:$0xff]
    %v182 = vld [vmem:[%s4] sm:$0x1]
    %v184 = vlaneseq
    %v185 = vshrl.u32 %v184, 7
    %v186 = vsub.s32 0, %v185
    %v187 = vrot.slane %v182, %v186
    %189 = vmatprep.subr.mxu0 0.0
    %190 = vmatpush1.msra.mxu0 %v181
    %191 = vmatprep.subr.mxu0 0.0
    %192 = vmatpush1.msra.mxu0 %v180
    %193 = vmatprep.subr.mxu0 0.0
    %194 = vmatpush1.msra.mxu0 %v179
    %195 = vmatprep.subr.mxu0 0.0
    %196 = vmatpush1.msra.mxu0 %v178
    %197 = vmatprep.subr.mxu0 0.0
    %198 = vmatpush1.msra.mxu0 %v177
    %199 = vmatprep.subr.mxu0 0.0
    %200 = vmatpush1.msra.mxu0 %v176
    %201 = vmatprep.subr.mxu0 0.0
    %202 = vmatpush1.msra.mxu0 %v175
    %203 = vmatprep.subr.mxu0 0.0
    %204 = vmatpush1.msra.mxu0 %v174
    %205 = vmatprep.subr.mxu0 0.0
    %206 = vmatpush1.msra.mxu0 %v173
    %207 = vmatprep.subr.mxu0 0.0
    %208 = vmatpush1.msra.mxu0 %v172
    %209 = vmatprep.subr.mxu0 0.0
    %210 = vmatpush1.msra.mxu0 %v171
    %211 = vmatprep.subr.mxu0 0.0
    %212 = vmatpush1.msra.mxu0 %v170
    %213 = vmatprep.subr.mxu0 0.0
    %214 = vmatpush1.msra.mxu0 %v169
    %215 = vmatprep.subr.mxu0 0.0
    %216 = vmatpush1.msra.mxu0 %v168
    %217 = vmatprep.subr.mxu0 0.0
    %218 = vmatpush1.msra.mxu0 %v167
    %219 = vmatprep.subr.mxu0 0.0
    %220 = vmatpush1.msra.mxu0 %v166
    %221 = vmatprep.subr.mxu0 0.0
    %222 = vmatpush2.msra.mxu0 0.0
    %223 = vmatprep.subr.mxu0 0.0
    %224 = vmatpush2.msra.mxu0 0.0
    %225 = vmatprep.subr.mxu0 0.0
    %226 = vmatpush2.msra.mxu0 0.0
    %227 = vmatprep.subr.mxu0 0.0
    %228 = vmatpush2.msra.mxu0 0.0
    %229 = vmatprep.subr.mxu0 0.0
    %230 = vmatpush2.msra.mxu0 0.0
    %231 = vmatprep.subr.mxu0 0.0
    %232 = vmatpush2.msra.mxu0 0.0
    %233 = vmatprep.subr.mxu0 0.0
    %234 = vmatpush2.msra.mxu0 0.0
    %235 = vmatprep.subr.mxu0 0.0
    %236 = vmatpush2.msra.mxu0 0.0
    %237 = vmatprep.subr.mxu0 0.0
    %238 = vmatpush2.msra.mxu0 0.0
    %239 = vmatprep.subr.mxu0 0.0
    %240 = vmatpush2.msra.mxu0 0.0
    %241 = vmatprep.subr.mxu0 0.0
    %242 = vmatpush2.msra.mxu0 0.0
    %243 = vmatprep.subr.mxu0 0.0
    %244 = vmatpush2.msra.mxu0 0.0
    %245 = vmatprep.subr.mxu0 0.0
    %246 = vmatpush2.msra.mxu0 0.0
    %247 = vmatprep.subr.mxu0 0.0
    %248 = vmatpush2.msra.mxu0 0.0
    %249 = vmatprep.subr.mxu0 0.0
    %250 = vmatpush2.msra.mxu0 0.0
    %251 = vmatprep.subr.mxu0 0.0
    %252 = vmatpush2.msra.mxu0 0.0
    %253 = vmatprep.mubr.f32.mxu0 0.0
    %254 = vmatmul.mubr.f32.gmra.mxu0 %v164
    %v255 = vpop.f32.mrf.mxu0
    %v256 = vadd.f32 %v187, %v255
    %v257 = vpop.f32.mrf.mxu0
    %258 = vdwg.mxu0
    %v259 = vtanh.pop %v256
    %260 = vst [vmem:[#allocation8] sm:$0xff] %v259
    // Predicated region
    $region34: #{tpu_custom_call.1} parent=1 // pred_check
      _
    $region35: #{tpu_custom_call.1} parent=1 // pred_check_branch
      %262 = sbr.rel (0) target = $region37
    $region36: #{tpu_custom_call.1} parent=1 // pred_region
      %s264 = ssub.s32 128, 128
      %265 = vsyncadd [#allocation4], %s264
      %s267 = sshll.u32 [#allocation8], 4
      %s268 = int_to_ptr.vmem [resolvable:$true] %s267
      %270 = dma.vmem_to_hbm [thread:$0]  %s268, 128, %s5, [#allocation4]
    $region37: #{tpu_custom_call.1} parent=1 // pred_fallthru
      _
    // Predicated region
    $region38: #{tpu_custom_call.1} parent=1 // pred_check
      _
    $region39: #{tpu_custom_call.1} parent=1 // pred_check_branch
      %272 = sbr.rel (0) target = $region41
    $region40: #{tpu_custom_call.1} parent=1 // pred_region
      %s274 = ssub.s32 128, 128
      %275 = vsyncadd [#allocation10], %s274
      %s277 = sshll.u32 [#allocation9], 4
      %s278 = int_to_ptr.vmem [resolvable:$true] %s277
      %280 = dma.vmem_to_hbm [thread:$0]  %s278, 128, %s6, [#allocation10]
    $region41: #{tpu_custom_call.1} parent=1 // pred_fallthru
      _
    // Predicated region
    $region42: #{tpu_custom_call.1} parent=1 // pred_check
      _
    $region43: #{tpu_custom_call.1} parent=1 // pred_check_branch
      %282 = sbr.rel (0) target = $region45
    $region44: #{tpu_custom_call.1} parent=1 // pred_region
      %283 = dma.done [#allocation4], 128
    $region45: #{tpu_custom_call.1} parent=1 // pred_fallthru
      _
    // Predicated region
    $region46: #{tpu_custom_call.1} parent=1 // pred_check
      _
    $region47: #{tpu_custom_call.1} parent=1 // pred_check_branch
      %285 = sbr.rel (0) target = $region49
    $region48: #{tpu_custom_call.1} parent=1 // pred_region
      %286 = dma.done [#allocation10], 128
    $region49: #{tpu_custom_call.1} parent=1 // pred_fallthru
      _
    %287 = vsyncpa [#allocation3], 1
    %288 = vsyncpa [#allocation6], 1
    %289 = vsyncpa [#allocation4], 1
    %290 = vsyncpa [#allocation10], 1

// kernel: tpu_custom_call.1
$region0: #{tpu_custom_call.1}
  #allocation0 [shape = 'u32[]', space=smem, size = 0x4, offset = 0x4, fixed_abs, tag = 'smem constant byte address 0x4 - core index']
  #allocation1 [shape = 'u32[144,128]{1,0:T(1,128)}', space=vmem, size = 0x12000, scoped, tag = 'internal scratch']
  %s0 = inlined_call_operand.hbm [shape: f32[8,128], index: 0, kind: input, shape index: {}]
  %s1 = inlined_call_operand.hbm [shape: f32[128,128], index: 1, kind: input, shape index: {}]
  %s2 = inlined_call_operand.vmem [shape: f32[1,128], index: 2, kind: input, shape index: {}]
  %s3 = inlined_call_operand.hbm [shape: f32[128,128], index: 3, kind: input, shape index: {}]
  %s4 = inlined_call_operand.vmem [shape: f32[1,128], index: 4, kind: input, shape index: {}]
  %s5 = inlined_call_operand.hbm [shape: f32[8,128], index: 5, kind: output, shape index: {0}]
  %s6 = inlined_call_operand.hbm [shape: f32[8,128], index: 6, kind: output, shape index: {1}]
  %7 = xla_tuple %s5, %s6
  %s8 = sld [smem:[#allocation0]]
  $region50: #{tpu_custom_call.1} parent=0
    _
  %s10 = ssub.s32 1, %s8
  %s11 = scalar_select 0, %s10, %s8
  $region1: #{tpu_custom_call.1} parent=0
    #allocation2 [shape = 'u8[4096]{0}', space=vmem, size = 0x1000, scoped, tag = 'input window, operand 0, single buffered']
    #allocation3 [shape = 's32[1]{0}', space=sflag, size = 0x4, scoped, tag = 'scoped memory for tpu_custom_call.1']
    #allocation4 [shape = 's32[1]{0}', space=sflag, size = 0x4, scoped, tag = 'scoped memory for tpu_custom_call.1']
    #allocation5 [shape = 'u8[65536]{0}', space=vmem, size = 0x10000, scoped, tag = 'input window, operand 1, single buffered']
    #allocation6 [shape = 's32[1]{0}', space=sflag, size = 0x4, scoped, tag = 'scoped memory for tpu_custom_call.1']
    #allocation7 [shape = 'u8[65536]{0}', space=vmem, size = 0x10000, scoped, tag = 'input window, operand 3, single buffered']
    #allocation8 [shape = 'u8[4096]{0}', space=vmem, size = 0x1000, scoped, tag = 'output window, operand 0, single buffered']
    #allocation9 [shape = 'u8[4096]{0}', space=vmem, size = 0x1000, scoped, tag = 'output window, operand 1, single buffered']
    #allocation10 [shape = 's32[1]{0}', space=sflag, size = 0x4, scoped, tag = 'scoped memory for tpu_custom_call.1']
    %12 = vsyncpa [#allocation3], 0
    %13 = vsyncpa [#allocation6], 0
    %14 = vsyncpa [#allocation4], 0
    %15 = vsyncpa [#allocation10], 0
    // Predicated region
    $region2: #{tpu_custom_call.1} parent=1 // pred_check
      _
    $region3: #{tpu_custom_call.1} parent=1 // pred_check_branch
      %17 = sbr.rel (0) target = $region5
    $region4: #{tpu_custom_call.1} parent=1 // pred_region
      %s19 = ssub.s32 128, 128
      %20 = vsyncadd [#allocation3], %s19
      %s22 = sshll.u32 [#allocation2], 4
      %s23 = int_to_ptr.vmem [resolvable:$true] %s22
      %25 = dma.hbm_to_vmem [thread:$0]  %s0, 128, %s23, [#allocation3]
    $region5: #{tpu_custom_call.1} parent=1 // pred_fallthru
      _
    // Predicated region
    $region6: #{tpu_custom_call.1} parent=1 // pred_check
      _
    $region7: #{tpu_custom_call.1} parent=1 // pred_check_branch
      %27 = sbr.rel (0) target = $region9
    $region8: #{tpu_custom_call.1} parent=1 // pred_region
      %s29 = ssub.s32 2048, 2048
      %30 = vsyncadd [#allocation6], %s29
      %s31 = sshll.u32 [#allocation5], 4
      %s32 = int_to_ptr.vmem [resolvable:$true] %s31
      %37 = dma.hbm_to_vmem [thread:$0]  %s1, 2048, %s32, [#allocation6], 128, 128, 8
    $region9: #{tpu_custom_call.1} parent=1 // pred_fallthru
      _
    // Predicated region
    $region10: #{tpu_custom_call.1} parent=1 // pred_check
      _
    $region11: #{tpu_custom_call.1} parent=1 // pred_check_branch
      %39 = sbr.rel (0) target = $region13
    $region12: #{tpu_custom_call.1} parent=1 // pred_region
      _
    $region13: #{tpu_custom_call.1} parent=1 // pred_fallthru
      _
    // Predicated region
    $region14: #{tpu_custom_call.1} parent=1 // pred_check
      _
    $region15: #{tpu_custom_call.1} parent=1 // pred_check_branch
      %41 = sbr.rel (0) target = $region17
    $region16: #{tpu_custom_call.1} parent=1 // pred_region
      %s43 = ssub.s32 2048, 2048
      %44 = vsyncadd [#allocation6], %s43
      %s45 = sshll.u32 [#allocation7], 4
      %s46 = int_to_ptr.vmem [resolvable:$true] %s45
      %51 = dma.hbm_to_vmem [thread:$0]  %s3, 2048, %s46, [#allocation6], 128, 128, 8
    $region17: #{tpu_custom_call.1} parent=1 // pred_fallthru
      _
    // Predicated region
    $region18: #{tpu_custom_call.1} parent=1 // pred_check
      _
    $region19: #{tpu_custom_call.1} parent=1 // pred_check_branch
      %53 = sbr.rel (0) target = $region21
    $region20: #{tpu_custom_call.1} parent=1 // pred_region
      _
    $region21: #{tpu_custom_call.1} parent=1 // pred_fallthru
      _
    // Predicated region
    $region22: #{tpu_custom_call.1} parent=1 // pred_check
      _
    $region23: #{tpu_custom_call.1} parent=1 // pred_check_branch
      %55 = sbr.rel (0) target = $region25
    $region24: #{tpu_custom_call.1} parent=1 // pred_region
      %56 = dma.done [#allocation3], 128
    $region25: #{tpu_custom_call.1} parent=1 // pred_fallthru
      _
    // Predicated region
    $region26: #{tpu_custom_call.1} parent=1 // pred_check
      _
    $region27: #{tpu_custom_call.1} parent=1 // pred_check_branch
      %58 = sbr.rel (0) target = $region29
    $region28: #{tpu_custom_call.1} parent=1 // pred_region
      %59 = dma.done [#allocation6], 2048
    $region29: #{tpu_custom_call.1} parent=1 // pred_fallthru
      _
    // Predicated region
    $region30: #{tpu_custom_call.1} parent=1 // pred_check
      _
    $region31: #{tpu_custom_call.1} parent=1 // pred_check_branch
      %61 = sbr.rel (0) target = $region33
    $region32: #{tpu_custom_call.1} parent=1 // pred_region
      %62 = dma.done [#allocation6], 2048
    $region33: #{tpu_custom_call.1} parent=1 // pred_fallthru
      _
    %v63 = vld [vmem:[#allocation2] sm:$0xff]
    %v64 = vld [vmem:[#allocation5] sm:$0xff]
    %v65 = vld [vmem:[#allocation5 + $0x8] sm:$0xff]
    %v66 = vld [vmem:[#allocation5 + $0x10] sm:$0xff]
    %v67 = vld [vmem:[#allocation5 + $0x18] sm:$0xff]
    %v68 = vld [vmem:[#allocation5 + $0x20] sm:$0xff]
    %v69 = vld [vmem:[#allocation5 + $0x28] sm:$0xff]
    %v70 = vld [vmem:[#allocation5 + $0x30] sm:$0xff]
    %v71 = vld [vmem:[#allocation5 + $0x38] sm:$0xff]
    %v72 = vld [vmem:[#allocation5 + $0x40] sm:$0xff]
    %v73 = vld [vmem:[#allocation5 + $0x48] sm:$0xff]
    %v74 = vld [vmem:[#allocation5 + $0x50] sm:$0xff]
    %v75 = vld [vmem:[#allocation5 + $0x58] sm:$0xff]
    %v76 = vld [vmem:[#allocation5 + $0x60] sm:$0xff]
    %v77 = vld [vmem:[#allocation5 + $0x68] sm:$0xff]
    %v78 = vld [vmem:[#allocation5 + $0x70] sm:$0xff]
    %v79 = vld [vmem:[#allocation5 + $0x78] sm:$0xff]
    %v80 = vld [vmem:[%s2] sm:$0x1]
    %v82 = vlaneseq
    %v83 = vshrl.u32 %v82, 7
    %v84 = vsub.s32 0, %v83
    %v85 = vrot.slane %v80, %v84
    %87 = vmatprep.subr.mxu0 0.0
    %88 = vmatpush1.msra.mxu0 %v79
    %89 = vmatprep.subr.mxu0 0.0
    %90 = vmatpush1.msra.mxu0 %v78
    %91 = vmatprep.subr.mxu0 0.0
    %92 = vmatpush1.msra.mxu0 %v77
    %93 = vmatprep.subr.mxu0 0.0
    %94 = vmatpush1.msra.mxu0 %v76
    %95 = vmatprep.subr.mxu0 0.0
    %96 = vmatpush1.msra.mxu0 %v75
    %97 = vmatprep.subr.mxu0 0.0
    %98 = vmatpush1.msra.mxu0 %v74
    %99 = vmatprep.subr.mxu0 0.0
    %100 = vmatpush1.msra.mxu0 %v73
    %101 = vmatprep.subr.mxu0 0.0
    %102 = vmatpush1.msra.mxu0 %v72
    %103 = vmatprep.subr.mxu0 0.0
    %104 = vmatpush1.msra.mxu0 %v71
    %105 = vmatprep.subr.mxu0 0.0
    %106 = vmatpush1.msra.mxu0 %v70
    %107 = vmatprep.subr.mxu0 0.0
    %108 = vmatpush1.msra.mxu0 %v69
    %109 = vmatprep.subr.mxu0 0.0
    %110 = vmatpush1.msra.mxu0 %v68
    %111 = vmatprep.subr.mxu0 0.0
    %112 = vmatpush1.msra.mxu0 %v67
    %113 = vmatprep.subr.mxu0 0.0
    %114 = vmatpush1.msra.mxu0 %v66
    %115 = vmatprep.subr.mxu0 0.0
    %116 = vmatpush1.msra.mxu0 %v65
    %117 = vmatprep.subr.mxu0 0.0
    %118 = vmatpush1.msra.mxu0 %v64
    %119 = vmatprep.subr.mxu0 0.0
    %120 = vmatpush2.msra.mxu0 0.0
    %121 = vmatprep.subr.mxu0 0.0
    %122 = vmatpush2.msra.mxu0 0.0
    %123 = vmatprep.subr.mxu0 0.0
    %124 = vmatpush2.msra.mxu0 0.0
    %125 = vmatprep.subr.mxu0 0.0
    %126 = vmatpush2.msra.mxu0 0.0
    %127 = vmatprep.subr.mxu0 0.0
    %128 = vmatpush2.msra.mxu0 0.0
    %129 = vmatprep.subr.mxu0 0.0
    %130 = vmatpush2.msra.mxu0 0.0
    %131 = vmatprep.subr.mxu0 0.0
    %132 = vmatpush2.msra.mxu0 0.0
    %133 = vmatprep.subr.mxu0 0.0
    %134 = vmatpush2.msra.mxu0 0.0
    %135 = vmatprep.subr.mxu0 0.0
    %136 = vmatpush2.msra.mxu0 0.0
    %137 = vmatprep.subr.mxu0 0.0
    %138 = vmatpush2.msra.mxu0 0.0
    %139 = vmatprep.subr.mxu0 0.0
    %140 = vmatpush2.msra.mxu0 0.0
    %141 = vmatprep.subr.mxu0 0.0
    %142 = vmatpush2.msra.mxu0 0.0
    %143 = vmatprep.subr.mxu0 0.0
    %144 = vmatpush2.msra.mxu0 0.0
    %145 = vmatprep.subr.mxu0 0.0
    %146 = vmatpush2.msra.mxu0 0.0
    %147 = vmatprep.subr.mxu0 0.0
    %148 = vmatpush2.msra.mxu0 0.0
    %149 = vmatprep.subr.mxu0 0.0
    %150 = vmatpush2.msra.mxu0 0.0
    %151 = vmatprep.mubr.f32.mxu0 0.0
    %152 = vmatmul.mubr.f32.gmra.mxu0 %v63
    %v153 = vpop.f32.mrf.mxu0
    %v154 = vadd.f32 %v85, %v153
    %v155 = vpop.f32.mrf.mxu0
    %156 = vdwg.mxu0
    %vm157 = vcmp.gt.f32.partialorder %v154, 0.0
    %v158 = vmin.f32 %v154, 0.0
    %v159 = vmul.f32 %v158, 1.442695
    %v160 = vpow.pop %v159
    %v161 = vsub.f32 %v160, 1.0
    %v162 = vmul.f32 %v161, 1.6732632
    %v163 = vsel %vm157, %v154, %v162
    %v164 = vmul.f32 %v163, 1.050701
    %165 = vst [vmem:[#allocation9] sm:$0xff] %v164
    %v166 = vld [vmem:[#allocation7] sm:$0xff]
    %v167 = vld [vmem:[#allocation7 + $0x8] sm:$0xff]
    %v168 = vld [vmem:[#allocation7 + $0x10] sm:$0xff]
    %v169 = vld [vmem:[#allocation7 + $0x18] sm:$0xff]
    %v170 = vld [vmem:[#allocation7 + $0x20] sm:$0xff]
    %v171 = vld [vmem:[#allocation7 + $0x28] sm:$0xff]
    %v172 = vld [vmem:[#allocation7 + $0x30] sm:$0xff]
    %v173 = vld [vmem:[#allocation7 + $0x38] sm:$0xff]
    %v174 = vld [vmem:[#allocation7 + $0x40] sm:$0xff]
    %v175 = vld [vmem:[#allocation7 + $0x48] sm:$0xff]
    %v176 = vld [vmem:[#allocation7 + $0x50] sm:$0xff]
    %v177 = vld [vmem:[#allocation7 + $0x58] sm:$0xff]
    %v178 = vld [vmem:[#allocation7 + $0x60] sm:$0xff]
    %v179 = vld [vmem:[#allocation7 + $0x68] sm:$0xff]
    %v180 = vld [vmem:[#allocation7 + $0x70] sm:$0xff]
    %v181 = vld [vmem:[#allocation7 + $0x78] sm:$0xff]
    %v182 = vld [vmem:[%s4] sm:$0x1]
    %v184 = vlaneseq
    %v185 = vshrl.u32 %v184, 7
    %v186 = vsub.s32 0, %v185
    %v187 = vrot.slane %v182, %v186
    %189 = vmatprep.subr.mxu0 0.0
    %190 = vmatpush1.msra.mxu0 %v181
    %191 = vmatprep.subr.mxu0 0.0
    %192 = vmatpush1.msra.mxu0 %v180
    %193 = vmatprep.subr.mxu0 0.0
    %194 = vmatpush1.msra.mxu0 %v179
    %195 = vmatprep.subr.mxu0 0.0
    %196 = vmatpush1.msra.mxu0 %v178
    %197 = vmatprep.subr.mxu0 0.0
    %198 = vmatpush1.msra.mxu0 %v177
    %199 = vmatprep.subr.mxu0 0.0
    %200 = vmatpush1.msra.mxu0 %v176
    %201 = vmatprep.subr.mxu0 0.0
    %202 = vmatpush1.msra.mxu0 %v175
    %203 = vmatprep.subr.mxu0 0.0
    %204 = vmatpush1.msra.mxu0 %v174
    %205 = vmatprep.subr.mxu0 0.0
    %206 = vmatpush1.msra.mxu0 %v173
    %207 = vmatprep.subr.mxu0 0.0
    %208 = vmatpush1.msra.mxu0 %v172
    %209 = vmatprep.subr.mxu0 0.0
    %210 = vmatpush1.msra.mxu0 %v171
    %211 = vmatprep.subr.mxu0 0.0
    %212 = vmatpush1.msra.mxu0 %v170
    %213 = vmatprep.subr.mxu0 0.0
    %214 = vmatpush1.msra.mxu0 %v169
    %215 = vmatprep.subr.mxu0 0.0
    %216 = vmatpush1.msra.mxu0 %v168
    %217 = vmatprep.subr.mxu0 0.0
    %218 = vmatpush1.msra.mxu0 %v167
    %219 = vmatprep.subr.mxu0 0.0
    %220 = vmatpush1.msra.mxu0 %v166
    %221 = vmatprep.subr.mxu0 0.0
    %222 = vmatpush2.msra.mxu0 0.0
    %223 = vmatprep.subr.mxu0 0.0
    %224 = vmatpush2.msra.mxu0 0.0
    %225 = vmatprep.subr.mxu0 0.0
    %226 = vmatpush2.msra.mxu0 0.0
    %227 = vmatprep.subr.mxu0 0.0
    %228 = vmatpush2.msra.mxu0 0.0
    %229 = vmatprep.subr.mxu0 0.0
    %230 = vmatpush2.msra.mxu0 0.0
    %231 = vmatprep.subr.mxu0 0.0
    %232 = vmatpush2.msra.mxu0 0.0
    %233 = vmatprep.subr.mxu0 0.0
    %234 = vmatpush2.msra.mxu0 0.0
    %235 = vmatprep.subr.mxu0 0.0
    %236 = vmatpush2.msra.mxu0 0.0
    %237 = vmatprep.subr.mxu0 0.0
    %238 = vmatpush2.msra.mxu0 0.0
    %239 = vmatprep.subr.mxu0 0.0
    %240 = vmatpush2.msra.mxu0 0.0
    %241 = vmatprep.subr.mxu0 0.0
    %242 = vmatpush2.msra.mxu0 0.0
    %243 = vmatprep.subr.mxu0 0.0
    %244 = vmatpush2.msra.mxu0 0.0
    %245 = vmatprep.subr.mxu0 0.0
    %246 = vmatpush2.msra.mxu0 0.0
    %247 = vmatprep.subr.mxu0 0.0
    %248 = vmatpush2.msra.mxu0 0.0
    %249 = vmatprep.subr.mxu0 0.0
    %250 = vmatpush2.msra.mxu0 0.0
    %251 = vmatprep.subr.mxu0 0.0
    %252 = vmatpush2.msra.mxu0 0.0
    %253 = vmatprep.mubr.f32.mxu0 0.0
    %254 = vmatmul.mubr.f32.gmra.mxu0 %v164
    %v255 = vpop.f32.mrf.mxu0
    %v256 = vadd.f32 %v187, %v255
    %v257 = vpop.f32.mrf.mxu0
    %258 = vdwg.mxu0
    %v259 = vtanh.pop %v256
    %260 = vst [vmem:[#allocation8] sm:$0xff] %v259
    // Predicated region
    $region34: #{tpu_custom_call.1} parent=1 // pred_check
      _
    $region35: #{tpu_custom_call.1} parent=1 // pred_check_branch
      %262 = sbr.rel (0) target = $region37
    $region36: #{tpu_custom_call.1} parent=1 // pred_region
      %s264 = ssub.s32 128, 128
      %265 = vsyncadd [#allocation4], %s264
      %s267 = sshll.u32 [#allocation8], 4
      %s268 = int_to_ptr.vmem [resolvable:$true] %s267
      %270 = dma.vmem_to_hbm [thread:$0]  %s268, 128, %s5, [#allocation4]
    $region37: #{tpu_custom_call.1} parent=1 // pred_fallthru
      _
    // Predicated region
    $region38: #{tpu_custom_call.1} parent=1 // pred_check
      _
    $region39: #{tpu_custom_call.1} parent=1 // pred_check_branch
      %272 = sbr.rel (0) target = $region41
    $region40: #{tpu_custom_call.1} parent=1 // pred_region
      %s274 = ssub.s32 128, 128
      %275 = vsyncadd [#allocation10], %s274
      %s277 = sshll.u32 [#allocation9], 4
      %s278 = int_to_ptr.vmem [resolvable:$true] %s277
      %280 = dma.vmem_to_hbm [thread:$0]  %s278, 128, %s6, [#allocation10]
    $region41: #{tpu_custom_call.1} parent=1 // pred_fallthru
      _
    // Predicated region
    $region42: #{tpu_custom_call.1} parent=1 // pred_check
      _
    $region43: #{tpu_custom_call.1} parent=1 // pred_check_branch
      %282 = sbr.rel (0) target = $region45
    $region44: #{tpu_custom_call.1} parent=1 // pred_region
      %283 = dma.done [#allocation4], 128
    $region45: #{tpu_custom_call.1} parent=1 // pred_fallthru
      _
    // Predicated region
    $region46: #{tpu_custom_call.1} parent=1 // pred_check
      _
    $region47: #{tpu_custom_call.1} parent=1 // pred_check_branch
      %285 = sbr.rel (0) target = $region49
    $region48: #{tpu_custom_call.1} parent=1 // pred_region
      %286 = dma.done [#allocation10], 128
    $region49: #{tpu_custom_call.1} parent=1 // pred_fallthru
      _
    %287 = vsyncpa [#allocation3], 1
    %288 = vsyncpa [#allocation6], 1
    %289 = vsyncpa [#allocation4], 1
    %290 = vsyncpa [#allocation10], 1

</llo_original>
